<compile_context>
chip_gen: v6e
topology: v6e:2x2x1
jax: 0.10.0
libtpu: 0.0.40
codegen_flags: <defaults>
</compile_context>

<pallas_src>
import jax
import jax.numpy as jnp
from jax.experimental import pallas as pl
from jax.experimental.pallas import tpu as pltpu

IN_DIM = 8
H1, H2, H3 = 512, 256, 128
OUT_DIM = 50
OUT_PAD = 128  # lane-dense padded output width


def _round_up(x, m):
    return ((x + m - 1) // m) * m


def _mlp_kernel(x_ref, w1_ref, b1_ref, w2_ref, b2_ref,
                w3_ref, b3_ref, w4_ref, b4_ref, o_ref):
    # x / weights: bf16 (MXU-native), biases: f32.  MXU accumulates in f32,
    # bias add + ReLU run in f32 on the VPU, re-cast to bf16 between layers.
    x = x_ref[...]                                                     # (TB, 8) bf16

    h1 = jnp.dot(x, w1_ref[...], preferred_element_type=jnp.float32) + b1_ref[...]
    h1 = jnp.maximum(h1, 0.0).astype(jnp.bfloat16)                     # (TB, 512)

    h2 = jnp.dot(h1, w2_ref[...], preferred_element_type=jnp.float32) + b2_ref[...]
    h2 = jnp.maximum(h2, 0.0).astype(jnp.bfloat16)                     # (TB, 256)

    h3 = jnp.dot(h2, w3_ref[...], preferred_element_type=jnp.float32) + b3_ref[...]
    h3 = jnp.maximum(h3, 0.0).astype(jnp.bfloat16)                     # (TB, 128)

    logits = jnp.dot(h3, w4_ref[...], preferred_element_type=jnp.float32) + b4_ref[...]
    o_ref[...] = logits.astype(o_ref.dtype)                            # (TB, 128) lane-dense


def bbox_model_forward(boxes, params, block_b=256):
    """boxes: (B, 2, 4) float32. Returns logits (B, 50) float32."""
    B = boxes.shape[0]
    x = boxes.reshape(B, -1)                       # nn.Flatten (row-major)
    (w1, b1, w2, b2, w3, b3, w4, b4) = params

    # Pad the final layer to a lane-dense 128-wide output (zeros past col 50).
    w4p = jnp.zeros((w4.shape[0], OUT_PAD), w4.dtype).at[:, :OUT_DIM].set(w4)
    b4p = jnp.zeros((1, OUT_PAD), b4.dtype).at[:, :OUT_DIM].set(b4)

    # bf16 matmul inputs, f32 biases (bias add / ReLU stay f32 on the VPU).
    xw = x.astype(jnp.bfloat16)
    ws = [w.astype(jnp.bfloat16) for w in (w1, w2, w3, w4p)]
    bs = [b.astype(jnp.float32) for b in (b1, b2, b3, b4p)]

    # Batch tiling: TB a multiple of 8; pad B up to a multiple of TB.
    TB = min(block_b, _round_up(B, 8))
    B_pad = _round_up(B, TB)
    if B_pad != B:
        xw = jnp.pad(xw, ((0, B_pad - B), (0, 0)))
    nb = B_pad // TB

    def resident(a):  # full 2-D array, constant index -> stays in VMEM across steps
        return pl.BlockSpec(a.shape, lambda i: (0, 0))

    flops = 2 * B_pad * (IN_DIM * H1 + H1 * H2 + H2 * H3 + H3 * OUT_PAD)
    bytes_accessed = (int(xw.size) * 2
                      + sum(int(w.size) * 2 for w in ws)
                      + sum(int(b.size) * 4 for b in bs)
                      + B_pad * OUT_PAD * 4)

    out = pl.pallas_call(
        _mlp_kernel,
        out_shape=jax.ShapeDtypeStruct((B_pad, OUT_PAD), jnp.float32),
        grid_spec=pltpu.PrefetchScalarGridSpec(
            num_scalar_prefetch=0,
            grid=(nb,),
            in_specs=[pl.BlockSpec((TB, IN_DIM), lambda i: (i, 0)),
                      resident(ws[0]), resident(bs[0]),
                      resident(ws[1]), resident(bs[1]),
                      resident(ws[2]), resident(bs[2]),
                      resident(ws[3]), resident(bs[3])],
            out_specs=pl.BlockSpec((TB, OUT_PAD), lambda i: (i, 0)),
        ),
        compiler_params=pltpu.CompilerParams(
            dimension_semantics=("parallel",)),
        cost_estimate=pl.CostEstimate(
            flops=flops, transcendentals=0, bytes_accessed=bytes_accessed),
    )(xw, ws[0], bs[0], ws[1], bs[1], ws[2], bs[2], ws[3], bs[3])

    return out[:B, :OUT_DIM]


def init_params(key):
    """Deterministic init mimicking nn.Linear default (uniform +/- 1/sqrt(fan_in)).
    Weights stored as (in, out) = PyTorch W.T; biases as (1, out)."""
    dims = [(IN_DIM, H1), (H1, H2), (H2, H3), (H3, OUT_DIM)]
    params = []
    for (fan_in, fan_out) in dims:
        key, kw, kb = jax.random.split(key, 3)
        bound = 1.0 / (fan_in ** 0.5)
        w = jax.random.uniform(kw, (fan_in, fan_out), jnp.float32, -bound, bound)
        b = jax.random.uniform(kb, (1, fan_out), jnp.float32, -bound, bound)
        params += [w, b]
    return tuple(params)


def _reference_forward(boxes, params):
    """Pure-JAX reference with the same bf16-input / f32-accumulate quantization."""
    (w1, b1, w2, b2, w3, b3, w4, b4) = params

    def layer(h, w, b, relu=True):
        y = jnp.dot(h.astype(jnp.bfloat16), w.astype(jnp.bfloat16),
                    preferred_element_type=jnp.float32) + b
        if relu:
            y = jnp.maximum(y, 0.0)
        return y

    h = boxes.reshape(boxes.shape[0], -1)
    h = layer(h, w1, b1)
    h = layer(h, w2, b2)
    h = layer(h, w3, b3)
    return layer(h, w4, b4, relu=False)


if __name__ == "__main__":
    key = jax.random.PRNGKey(0)
    kp, kx = jax.random.split(key)

    params = init_params(kp)
    boxes = jax.random.normal(kx, (16, 2, 4), dtype=jnp.float32)  # (B, 2, 4)

    logits = bbox_model_forward(boxes, params)
    logits = jax.block_until_ready(logits)

    ref = _reference_forward(boxes, params)
    assert logits.shape == (16, OUT_DIM)
    assert jnp.allclose(logits, ref, atol=2e-2, rtol=2e-2), "mismatch vs reference"

    print("KERNEL_OK")
</pallas_src>

<mosaic_0001>
module attributes {stable_mosaic.version = 11 : i64} {
  func.func @_mlp_kernel(%arg0: i32, %arg1: memref<16x8xbf16, #tpu.memory_space<vmem>>, %arg2: memref<8x512xbf16, #tpu.memory_space<vmem>>, %arg3: memref<1x512xf32, #tpu.memory_space<vmem>>, %arg4: memref<512x256xbf16, #tpu.memory_space<vmem>>, %arg5: memref<1x256xf32, #tpu.memory_space<vmem>>, %arg6: memref<256x128xbf16, #tpu.memory_space<vmem>>, %arg7: memref<1x128xf32, #tpu.memory_space<vmem>>, %arg8: memref<128x128xbf16, #tpu.memory_space<vmem>>, %arg9: memref<1x128xf32, #tpu.memory_space<vmem>>, %arg10: memref<16x128xf32, #tpu.memory_space<vmem>>) attributes {dimension_semantics = [#tpu.dimension_semantics<parallel>], iteration_bounds = array<i64: 1>, scalar_prefetch = 0 : i64, scratch_operands = 0 : i64, tpu.core_type = #tpu.core_type<tc>, window_params = [{transform_indices = @transform_0, window_bounds = array<i64: 16, 8>}, {pipeline_mode = #tpu.pipeline_mode<synchronous>, transform_indices = @transform_1, window_bounds = array<i64: 8, 512>}, {pipeline_mode = #tpu.pipeline_mode<synchronous>, transform_indices = @transform_2, window_bounds = array<i64: 1, 512>}, {pipeline_mode = #tpu.pipeline_mode<synchronous>, transform_indices = @transform_3, window_bounds = array<i64: 512, 256>}, {pipeline_mode = #tpu.pipeline_mode<synchronous>, transform_indices = @transform_4, window_bounds = array<i64: 1, 256>}, {pipeline_mode = #tpu.pipeline_mode<synchronous>, transform_indices = @transform_5, window_bounds = array<i64: 256, 128>}, {pipeline_mode = #tpu.pipeline_mode<synchronous>, transform_indices = @transform_6, window_bounds = array<i64: 1, 128>}, {pipeline_mode = #tpu.pipeline_mode<synchronous>, transform_indices = @transform_7, window_bounds = array<i64: 128, 128>}, {pipeline_mode = #tpu.pipeline_mode<synchronous>, transform_indices = @transform_8, window_bounds = array<i64: 1, 128>}, {transform_indices = @transform_9, window_bounds = array<i64: 16, 128>}]} {
    %c0 = arith.constant 0 : index
    %c0_0 = arith.constant 0 : index
    %0 = vector.load %arg1[%c0, %c0_0] : memref<16x8xbf16, #tpu.memory_space<vmem>>, vector<16x8xbf16>
    %c0_1 = arith.constant 0 : index
    %c0_2 = arith.constant 0 : index
    %1 = vector.load %arg2[%c0_1, %c0_2] : memref<8x512xbf16, #tpu.memory_space<vmem>>, vector<8x512xbf16>
    %cst = arith.constant dense<0.000000e+00> : vector<16x512xf32>
    %2 = tpu.matmul %0, %1, %cst {dimension_numbers = #tpu.dot_dimension_numbers<[1], [0], [0], [1], [0, 0, 1, 1], [], []>} : vector<16x8xbf16>, vector<8x512xbf16>, vector<16x512xf32> -> vector<16x512xf32>
    %c0_3 = arith.constant 0 : index
    %c0_4 = arith.constant 0 : index
    %3 = vector.load %arg3[%c0_3, %c0_4] : memref<1x512xf32, #tpu.memory_space<vmem>>, vector<1x512xf32>
    %4 = vector.broadcast %3 : vector<1x512xf32> to vector<16x512xf32>
    %5 = arith.addf %2, %4 : vector<16x512xf32>
    %cst_5 = arith.constant 0.000000e+00 : f32
    %6 = vector.broadcast %cst_5 : f32 to vector<16x512xf32>
    %7 = arith.maximumf %5, %6 : vector<16x512xf32>
    %8 = arith.truncf %7 : vector<16x512xf32> to vector<16x512xbf16>
    %c0_6 = arith.constant 0 : index
    %c0_7 = arith.constant 0 : index
    %9 = vector.load %arg4[%c0_6, %c0_7] : memref<512x256xbf16, #tpu.memory_space<vmem>>, vector<512x256xbf16>
    %cst_8 = arith.constant dense<0.000000e+00> : vector<16x256xf32>
    %10 = tpu.matmul %8, %9, %cst_8 {dimension_numbers = #tpu.dot_dimension_numbers<[1], [0], [0], [1], [0, 0, 1, 1], [], []>} : vector<16x512xbf16>, vector<512x256xbf16>, vector<16x256xf32> -> vector<16x256xf32>
    %c0_9 = arith.constant 0 : index
    %c0_10 = arith.constant 0 : index
    %11 = vector.load %arg5[%c0_9, %c0_10] : memref<1x256xf32, #tpu.memory_space<vmem>>, vector<1x256xf32>
    %12 = vector.broadcast %11 : vector<1x256xf32> to vector<16x256xf32>
    %13 = arith.addf %10, %12 : vector<16x256xf32>
    %cst_11 = arith.constant 0.000000e+00 : f32
    %14 = vector.broadcast %cst_11 : f32 to vector<16x256xf32>
    %15 = arith.maximumf %13, %14 : vector<16x256xf32>
    %16 = arith.truncf %15 : vector<16x256xf32> to vector<16x256xbf16>
    %c0_12 = arith.constant 0 : index
    %c0_13 = arith.constant 0 : index
    %17 = vector.load %arg6[%c0_12, %c0_13] : memref<256x128xbf16, #tpu.memory_space<vmem>>, vector<256x128xbf16>
    %cst_14 = arith.constant dense<0.000000e+00> : vector<16x128xf32>
    %18 = tpu.matmul %16, %17, %cst_14 {dimension_numbers = #tpu.dot_dimension_numbers<[1], [0], [0], [1], [0, 0, 1, 1], [], []>} : vector<16x256xbf16>, vector<256x128xbf16>, vector<16x128xf32> -> vector<16x128xf32>
    %c0_15 = arith.constant 0 : index
    %c0_16 = arith.constant 0 : index
    %19 = vector.load %arg7[%c0_15, %c0_16] : memref<1x128xf32, #tpu.memory_space<vmem>>, vector<1x128xf32>
    %20 = vector.broadcast %19 : vector<1x128xf32> to vector<16x128xf32>
    %21 = arith.addf %18, %20 : vector<16x128xf32>
    %cst_17 = arith.constant 0.000000e+00 : f32
    %22 = vector.broadcast %cst_17 : f32 to vector<16x128xf32>
    %23 = arith.maximumf %21, %22 : vector<16x128xf32>
    %24 = arith.truncf %23 : vector<16x128xf32> to vector<16x128xbf16>
    %c0_18 = arith.constant 0 : index
    %c0_19 = arith.constant 0 : index
    %25 = vector.load %arg8[%c0_18, %c0_19] : memref<128x128xbf16, #tpu.memory_space<vmem>>, vector<128x128xbf16>
    %cst_20 = arith.constant dense<0.000000e+00> : vector<16x128xf32>
    %26 = tpu.matmul %24, %25, %cst_20 {dimension_numbers = #tpu.dot_dimension_numbers<[1], [0], [0], [1], [0, 0, 1, 1], [], []>} : vector<16x128xbf16>, vector<128x128xbf16>, vector<16x128xf32> -> vector<16x128xf32>
    %c0_21 = arith.constant 0 : index
    %c0_22 = arith.constant 0 : index
    %27 = vector.load %arg9[%c0_21, %c0_22] : memref<1x128xf32, #tpu.memory_space<vmem>>, vector<1x128xf32>
    %28 = vector.broadcast %27 : vector<1x128xf32> to vector<16x128xf32>
    %29 = arith.addf %26, %28 : vector<16x128xf32>
    %c0_23 = arith.constant 0 : index
    %c0_24 = arith.constant 0 : index
    %30 = vector.load %arg10[%c0_23, %c0_24] : memref<16x128xf32, #tpu.memory_space<vmem>>, vector<16x128xf32>
    tpu.vector_store %arg10[%c0_23, %c0_24], %29 {strides = array<i32>} : memref<16x128xf32, #tpu.memory_space<vmem>>, vector<16x128xf32>,
    return
  }
  func.func @transform_0(%arg0: i32) -> (i32, i32) {
    %c0_i32 = arith.constant 0 : i32
    %c0_i32_0 = arith.constant 0 : i32
    return %arg0, %c0_i32 : i32, i32
  }
  func.func @transform_1(%arg0: i32) -> (i32, i32) {
    %c0_i32 = arith.constant 0 : i32
    %c0_i32_0 = arith.constant 0 : i32
    %c0_i32_1 = arith.constant 0 : i32
    return %c0_i32, %c0_i32_0 : i32, i32
  }
  func.func @transform_2(%arg0: i32) -> (i32, i32) {
    %c0_i32 = arith.constant 0 : i32
    %c0_i32_0 = arith.constant 0 : i32
    %c0_i32_1 = arith.constant 0 : i32
    return %c0_i32, %c0_i32_0 : i32, i32
  }
  func.func @transform_3(%arg0: i32) -> (i32, i32) {
    %c0_i32 = arith.constant 0 : i32
    %c0_i32_0 = arith.constant 0 : i32
    %c0_i32_1 = arith.constant 0 : i32
    return %c0_i32, %c0_i32_0 : i32, i32
  }
  func.func @transform_4(%arg0: i32) -> (i32, i32) {
    %c0_i32 = arith.constant 0 : i32
    %c0_i32_0 = arith.constant 0 : i32
    %c0_i32_1 = arith.constant 0 : i32
    return %c0_i32, %c0_i32_0 : i32, i32
  }
  func.func @transform_5(%arg0: i32) -> (i32, i32) {
    %c0_i32 = arith.constant 0 : i32
    %c0_i32_0 = arith.constant 0 : i32
    %c0_i32_1 = arith.constant 0 : i32
    return %c0_i32, %c0_i32_0 : i32, i32
  }
  func.func @transform_6(%arg0: i32) -> (i32, i32) {
    %c0_i32 = arith.constant 0 : i32
    %c0_i32_0 = arith.constant 0 : i32
    %c0_i32_1 = arith.constant 0 : i32
    return %c0_i32, %c0_i32_0 : i32, i32
  }
  func.func @transform_7(%arg0: i32) -> (i32, i32) {
    %c0_i32 = arith.constant 0 : i32
    %c0_i32_0 = arith.constant 0 : i32
    %c0_i32_1 = arith.constant 0 : i32
    return %c0_i32, %c0_i32_0 : i32, i32
  }
  func.func @transform_8(%arg0: i32) -> (i32, i32) {
    %c0_i32 = arith.constant 0 : i32
    %c0_i32_0 = arith.constant 0 : i32
    %c0_i32_1 = arith.constant 0 : i32
    return %c0_i32, %c0_i32_0 : i32, i32
  }
  func.func @transform_9(%arg0: i32) -> (i32, i32) {
    %c0_i32 = arith.constant 0 : i32
    %c0_i32_0 = arith.constant 0 : i32
    return %arg0, %c0_i32 : i32, i32
  }
}

</mosaic_0001>

<llo_original>
// kernel: tpu_custom_call.1
$region0: #{tpu_custom_call.1}
  #allocation0 [shape = 'u32[]', space=smem, size = 0x4, offset = 0x4, fixed_abs, tag = 'smem constant byte address 0x4 - core index']
  #allocation1 [shape = 'u32[144,128]{1,0:T(1,128)}', space=vmem, size = 0x12000, scoped, tag = 'internal scratch']
  %s0 = inlined_call_operand.vmem [shape: bf16[16,8], index: 0, kind: input, shape index: {}]
  %s1 = inlined_call_operand.hbm [shape: bf16[8,512], index: 1, kind: input, shape index: {}]
  %s2 = inlined_call_operand.vmem [shape: f32[1,512], index: 2, kind: input, shape index: {}]
  %s3 = inlined_call_operand.hbm [shape: bf16[512,256], index: 3, kind: input, shape index: {}]
  %s4 = inlined_call_operand.vmem [shape: f32[1,256], index: 4, kind: input, shape index: {}]
  %s5 = inlined_call_operand.hbm [shape: bf16[256,128], index: 5, kind: input, shape index: {}]
  %s6 = inlined_call_operand.vmem [shape: f32[1,128], index: 6, kind: input, shape index: {}]
  %s7 = inlined_call_operand.hbm [shape: bf16[128,128], index: 7, kind: input, shape index: {}]
  %s8 = inlined_call_operand.vmem [shape: f32[1,128], index: 8, kind: input, shape index: {}]
  %s9 = inlined_call_operand.hbm [shape: f32[16,128], index: 9, kind: output, shape index: {}]
  %s10 = sld [smem:[#allocation0]]
  $region62: #{tpu_custom_call.1} parent=0
    _
  %s12 = ssub.s32 1, %s10
  %s13 = scalar_select 0, %s12, %s10
  $region1: #{tpu_custom_call.1} parent=0
    #allocation2 [shape = 'u8[8192]{0}', space=vmem, size = 0x2000, scoped, tag = 'input window, operand 1, single buffered']
    #allocation3 [shape = 's32[1]{0}', space=sflag, size = 0x4, scoped, tag = 'scoped memory for tpu_custom_call.1']
    #allocation4 [shape = 's32[1]{0}', space=sflag, size = 0x4, scoped, tag = 'scoped memory for tpu_custom_call.1']
    #allocation5 [shape = 'u8[262144]{0}', space=vmem, size = 0x40000, scoped, tag = 'input window, operand 3, single buffered']
    #allocation6 [shape = 's32[1]{0}', space=sflag, size = 0x4, scoped, tag = 'scoped memory for tpu_custom_call.1']
    #allocation7 [shape = 'u8[65536]{0}', space=vmem, size = 0x10000, scoped, tag = 'input window, operand 5, single buffered']
    #allocation8 [shape = 'u8[32768]{0}', space=vmem, size = 0x8000, scoped, tag = 'input window, operand 7, single buffered']
    #allocation9 [shape = 's32[1]{0}', space=sflag, size = 0x4, scoped, tag = 'scoped memory for tpu_custom_call.1']
    #allocation10 [shape = 'u8[8192]{0}', space=vmem, size = 0x2000, scoped, tag = 'output window, operand 0, single buffered']
    %14 = vsyncpa [#allocation3], 0
    %15 = vsyncpa [#allocation6], 0
    %16 = vsyncpa [#allocation9], 0
    %17 = vsyncpa [#allocation4], 0
    // Predicated region
    $region2: #{tpu_custom_call.1} parent=1 // pred_check
      _
    $region3: #{tpu_custom_call.1} parent=1 // pred_check_branch
      %19 = sbr.rel (0) target = $region5
    $region4: #{tpu_custom_call.1} parent=1 // pred_region
      _
    $region5: #{tpu_custom_call.1} parent=1 // pred_fallthru
      _
    // Predicated region
    $region6: #{tpu_custom_call.1} parent=1 // pred_check
      _
    $region7: #{tpu_custom_call.1} parent=1 // pred_check_branch
      %21 = sbr.rel (0) target = $region9
    $region8: #{tpu_custom_call.1} parent=1 // pred_region
      %s23 = ssub.s32 256, 256
      %24 = vsyncadd [#allocation3], %s23
      %s26 = sshll.u32 [#allocation2], 4
      %s27 = int_to_ptr.vmem [resolvable:$true] %s26
      %29 = dma.hbm_to_vmem [thread:$0]  %s1, 256, %s27, [#allocation3]
    $region9: #{tpu_custom_call.1} parent=1 // pred_fallthru
      _
    // Predicated region
    $region10: #{tpu_custom_call.1} parent=1 // pred_check
      _
    $region11: #{tpu_custom_call.1} parent=1 // pred_check_branch
      %31 = sbr.rel (0) target = $region13
    $region12: #{tpu_custom_call.1} parent=1 // pred_region
      _
    $region13: #{tpu_custom_call.1} parent=1 // pred_fallthru
      _
    // Predicated region
    $region14: #{tpu_custom_call.1} parent=1 // pred_check
      _
    $region15: #{tpu_custom_call.1} parent=1 // pred_check_branch
      %33 = sbr.rel (0) target = $region17
    $region16: #{tpu_custom_call.1} parent=1 // pred_region
      %s35 = ssub.s32 8192, 8192
      %36 = vsyncadd [#allocation6], %s35
      %s37 = sshll.u32 [#allocation5], 4
      %s38 = int_to_ptr.vmem [resolvable:$true] %s37
      %43 = dma.hbm_to_vmem [thread:$0]  %s3, 8192, %s38, [#allocation6], 128, 128, 8
    $region17: #{tpu_custom_call.1} parent=1 // pred_fallthru
      _
    // Predicated region
    $region18: #{tpu_custom_call.1} parent=1 // pred_check
      _
    $region19: #{tpu_custom_call.1} parent=1 // pred_check_branch
      %45 = sbr.rel (0) target = $region21
    $region20: #{tpu_custom_call.1} parent=1 // pred_region
      _
    $region21: #{tpu_custom_call.1} parent=1 // pred_fallthru
      _
    // Predicated region
    $region22: #{tpu_custom_call.1} parent=1 // pred_check
      _
    $region23: #{tpu_custom_call.1} parent=1 // pred_check_branch
      %47 = sbr.rel (0) target = $region25
    $region24: #{tpu_custom_call.1} parent=1 // pred_region
      %s49 = ssub.s32 2048, 2048
      %50 = vsyncadd [#allocation6], %s49
      %s51 = sshll.u32 [#allocation7], 4
      %s52 = int_to_ptr.vmem [resolvable:$true] %s51
      %57 = dma.hbm_to_vmem [thread:$0]  %s5, 2048, %s52, [#allocation6], 64, 64, 4
    $region25: #{tpu_custom_call.1} parent=1 // pred_fallthru
      _
    // Predicated region
    $region26: #{tpu_custom_call.1} parent=1 // pred_check
      _
    $region27: #{tpu_custom_call.1} parent=1 // pred_check_branch
      %59 = sbr.rel (0) target = $region29
    $region28: #{tpu_custom_call.1} parent=1 // pred_region
      _
    $region29: #{tpu_custom_call.1} parent=1 // pred_fallthru
      _
    // Predicated region
    $region30: #{tpu_custom_call.1} parent=1 // pred_check
      _
    $region31: #{tpu_custom_call.1} parent=1 // pred_check_branch
      %61 = sbr.rel (0) target = $region33
    $region32: #{tpu_custom_call.1} parent=1 // pred_region
      %s63 = ssub.s32 1024, 1024
      %64 = vsyncadd [#allocation9], %s63
      %s65 = sshll.u32 [#allocation8], 4
      %s66 = int_to_ptr.vmem [resolvable:$true] %s65
      %71 = dma.hbm_to_vmem [thread:$0]  %s7, 1024, %s66, [#allocation9], 64, 64, 4
    $region33: #{tpu_custom_call.1} parent=1 // pred_fallthru
      _
    // Predicated region
    $region34: #{tpu_custom_call.1} parent=1 // pred_check
      _
    $region35: #{tpu_custom_call.1} parent=1 // pred_check_branch
      %73 = sbr.rel (0) target = $region37
    $region36: #{tpu_custom_call.1} parent=1 // pred_region
      _
    $region37: #{tpu_custom_call.1} parent=1 // pred_fallthru
      _
    // Predicated region
    $region38: #{tpu_custom_call.1} parent=1 // pred_check
      _
    $region39: #{tpu_custom_call.1} parent=1 // pred_check_branch
      %75 = sbr.rel (0) target = $region41
    $region40: #{tpu_custom_call.1} parent=1 // pred_region
      %76 = dma.done [#allocation3], 256
    $region41: #{tpu_custom_call.1} parent=1 // pred_fallthru
      _
    // Predicated region
    $region42: #{tpu_custom_call.1} parent=1 // pred_check
      _
    $region43: #{tpu_custom_call.1} parent=1 // pred_check_branch
      %78 = sbr.rel (0) target = $region45
    $region44: #{tpu_custom_call.1} parent=1 // pred_region
      %79 = dma.done [#allocation6], 8192
    $region45: #{tpu_custom_call.1} parent=1 // pred_fallthru
      _
    // Predicated region
    $region46: #{tpu_custom_call.1} parent=1 // pred_check
      _
    $region47: #{tpu_custom_call.1} parent=1 // pred_check_branch
      %81 = sbr.rel (0) target = $region49
    $region48: #{tpu_custom_call.1} parent=1 // pred_region
      %82 = dma.done [#allocation6], 2048
    $region49: #{tpu_custom_call.1} parent=1 // pred_fallthru
      _
    // Predicated region
    $region50: #{tpu_custom_call.1} parent=1 // pred_check
      _
    $region51: #{tpu_custom_call.1} parent=1 // pred_check_branch
      %84 = sbr.rel (0) target = $region53
    $region52: #{tpu_custom_call.1} parent=1 // pred_region
      %85 = dma.done [#allocation9], 1024
    $region53: #{tpu_custom_call.1} parent=1 // pred_fallthru
      _
    %v87 = vld [vmem:[%s0] sm:$0xf]
    %v88 = vld [vmem:[%s0 + $0x4] sm:$0xf]
    %v89 = vld [vmem:[#allocation2] sm:$0xff]
    %v90 = vld [vmem:[#allocation2 + $0x8] sm:$0xff]
    %v91 = vld [vmem:[%s2] sm:$0xf]
    %v93 = vlaneseq
    %v94 = vshrl.u32 %v93, 7
    %v95 = vsub.s32 0, %v94
    %v96 = vrot.slane %v91, %v95
    %v97 = vlaneseq
    %v98 = vshrl.u32 %v97, 7
    %v99 = vsub.s32 1, %v98
    %v100 = vrot.slane %v91, %v99
    %v101 = vlaneseq
    %v102 = vshrl.u32 %v101, 7
    %v103 = vsub.s32 2, %v102
    %v104 = vrot.slane %v91, %v103
    %v105 = vlaneseq
    %v106 = vshrl.u32 %v105, 7
    %v107 = vsub.s32 3, %v106
    %v108 = vrot.slane %v91, %v107
    %v115 = vunpack.c.l.b16 %v87
    %v116 = vunpack.c.l.b16 %v88
    %v117 = vpack.c.b16 %v116, %v115
    %v120 = vunpack.c.l.b16 %v89
    %v121 = vunpack.c.h.b16 %v89
    %v122 = vunpack.c.l.b16 %v90
    %v123 = vunpack.c.h.b16 %v90
    %v124 = vpack.c.b16 %v120, %v120
    %v125 = vpack.c.b16 %v121, %v121
    %v126 = vpack.c.b16 %v122, %v122
    %v127 = vpack.c.b16 %v123, %v123
    %vm128 = vcmask 64512
    %v130 = vsel %vm128, %v117, 0
    %vm132 = vcmask 1043456
    %v134 = vsel %vm132, %v124, 0
    %v137 = vsel %vm132, %v125, 0
    %v140 = vsel %vm132, %v126, 0
    %v143 = vsel %vm132, %v127, 0
    %145 = vmatprep.subr.bf16.mxu0 0
    %146 = vmatpush1.bf16.msra.mxu0 0
    %147 = vmatprep.subr.bf16.mxu0 0
    %148 = vmatpush1.bf16.msra.mxu0 0
    %149 = vmatprep.subr.bf16.mxu0 0
    %150 = vmatpush1.bf16.msra.mxu0 0
    %151 = vmatprep.subr.bf16.mxu0 0
    %152 = vmatpush1.bf16.msra.mxu0 0
    %153 = vmatprep.subr.bf16.mxu0 0
    %154 = vmatpush1.bf16.msra.mxu0 0
    %155 = vmatprep.subr.bf16.mxu0 0
    %156 = vmatpush1.bf16.msra.mxu0 0
    %157 = vmatprep.subr.bf16.mxu0 0
    %158 = vmatpush1.bf16.msra.mxu0 0
    %159 = vmatprep.subr.bf16.mxu0 %v137
    %160 = vmatpush1.bf16.msra.mxu0 %v134
    %161 = vmatprep.subr.bf16.mxu0 0
    %162 = vmatpush2.bf16.msra.mxu0 0
    %163 = vmatprep.subr.bf16.mxu0 0
    %164 = vmatpush2.bf16.msra.mxu0 0
    %165 = vmatprep.subr.bf16.mxu0 0
    %166 = vmatpush2.bf16.msra.mxu0 0
    %167 = vmatprep.subr.bf16.mxu0 0
    %168 = vmatpush2.bf16.msra.mxu0 0
    %169 = vmatprep.subr.bf16.mxu0 0
    %170 = vmatpush2.bf16.msra.mxu0 0
    %171 = vmatprep.subr.bf16.mxu0 0
    %172 = vmatpush2.bf16.msra.mxu0 0
    %173 = vmatprep.subr.bf16.mxu0 0
    %174 = vmatpush2.bf16.msra.mxu0 0
    %175 = vmatprep.subr.bf16.mxu0 0
    %176 = vmatpush2.bf16.msra.mxu0 0
    %177 = vmatprep.mubr.bf16.mxu0 0
    %178 = vmatmul.mubr.bf16.gmra.mxu0 %v130
    %v179 = vpop.f32.mrf.mxu0
    %v180 = vadd.f32 %v96, %v179
    %v181 = vpop.f32.mrf.mxu0
    %v182 = vadd.f32 %v100, %v181
    %v183 = vpop.f32.mrf.mxu0
    %v184 = vadd.f32 %v96, %v183
    %v185 = vpop.f32.mrf.mxu0
    %v186 = vadd.f32 %v100, %v185
    %187 = vdwg.mxu0
    %188 = vmatprep.subr.bf16.mxu0 0
    %189 = vmatpush1.bf16.msra.mxu0 0
    %190 = vmatprep.subr.bf16.mxu0 0
    %191 = vmatpush1.bf16.msra.mxu0 0
    %192 = vmatprep.subr.bf16.mxu0 0
    %193 = vmatpush1.bf16.msra.mxu0 0
    %194 = vmatprep.subr.bf16.mxu0 0
    %195 = vmatpush1.bf16.msra.mxu0 0
    %196 = vmatprep.subr.bf16.mxu0 0
    %197 = vmatpush1.bf16.msra.mxu0 0
    %198 = vmatprep.subr.bf16.mxu0 0
    %199 = vmatpush1.bf16.msra.mxu0 0
    %200 = vmatprep.subr.bf16.mxu0 0
    %201 = vmatpush1.bf16.msra.mxu0 0
    %202 = vmatprep.subr.bf16.mxu0 %v143
    %203 = vmatpush1.bf16.msra.mxu0 %v140
    %204 = vmatprep.subr.bf16.mxu0 0
    %205 = vmatpush2.bf16.msra.mxu0 0
    %206 = vmatprep.subr.bf16.mxu0 0
    %207 = vmatpush2.bf16.msra.mxu0 0
    %208 = vmatprep.subr.bf16.mxu0 0
    %209 = vmatpush2.bf16.msra.mxu0 0
    %210 = vmatprep.subr.bf16.mxu0 0
    %211 = vmatpush2.bf16.msra.mxu0 0
    %212 = vmatprep.subr.bf16.mxu0 0
    %213 = vmatpush2.bf16.msra.mxu0 0
    %214 = vmatprep.subr.bf16.mxu0 0
    %215 = vmatpush2.bf16.msra.mxu0 0
    %216 = vmatprep.subr.bf16.mxu0 0
    %217 = vmatpush2.bf16.msra.mxu0 0
    %218 = vmatprep.subr.bf16.mxu0 0
    %219 = vmatpush2.bf16.msra.mxu0 0
    %220 = vmatprep.mubr.bf16.mxu0 0
    %221 = vmatmul.mubr.bf16.gmra.mxu0 %v130
    %v222 = vpop.f32.mrf.mxu0
    %v223 = vadd.f32 %v104, %v222
    %v224 = vpop.f32.mrf.mxu0
    %v225 = vadd.f32 %v108, %v224
    %v226 = vpop.f32.mrf.mxu0
    %v227 = vadd.f32 %v104, %v226
    %v228 = vpop.f32.mrf.mxu0
    %v229 = vadd.f32 %v108, %v228
    %230 = vdwg.mxu0
    %v231 = vmax.f32 %v180, 0.0
    %v232 = vmax.f32 %v182, 0.0
    %v233 = vmax.f32 %v223, 0.0
    %v234 = vmax.f32 %v225, 0.0
    %v235 = vmax.f32 %v184, 0.0
    %v236 = vmax.f32 %v186, 0.0
    %v237 = vmax.f32 %v227, 0.0
    %v238 = vmax.f32 %v229, 0.0
    %v239 = vpack.c.bf16 %v235, %v231
    %v240 = vpack.c.bf16 %v236, %v232
    %v241 = vpack.c.bf16 %v237, %v233
    %v242 = vpack.c.bf16 %v238, %v234
    %v243 = vld [vmem:[#allocation5] sm:$0xff]
    %v244 = vld [vmem:[#allocation5 + $0x8] sm:$0xff]
    %v245 = vld [vmem:[#allocation5 + $0x10] sm:$0xff]
    %v246 = vld [vmem:[#allocation5 + $0x18] sm:$0xff]
    %v247 = vld [vmem:[#allocation5 + $0x20] sm:$0xff]
    %v248 = vld [vmem:[#allocation5 + $0x28] sm:$0xff]
    %v249 = vld [vmem:[#allocation5 + $0x30] sm:$0xff]
    %v250 = vld [vmem:[#allocation5 + $0x38] sm:$0xff]
    %v251 = vld [vmem:[#allocation5 + $0x40] sm:$0xff]
    %v252 = vld [vmem:[#allocation5 + $0x48] sm:$0xff]
    %v253 = vld [vmem:[#allocation5 + $0x50] sm:$0xff]
    %v254 = vld [vmem:[#allocation5 + $0x58] sm:$0xff]
    %v255 = vld [vmem:[#allocation5 + $0x60] sm:$0xff]
    %v256 = vld [vmem:[#allocation5 + $0x68] sm:$0xff]
    %v257 = vld [vmem:[#allocation5 + $0x70] sm:$0xff]
    %v258 = vld [vmem:[#allocation5 + $0x78] sm:$0xff]
    %v259 = vld [vmem:[#allocation5 + $0x80] sm:$0xff]
    %v260 = vld [vmem:[#allocation5 + $0x88] sm:$0xff]
    %v261 = vld [vmem:[#allocation5 + $0x90] sm:$0xff]
    %v262 = vld [vmem:[#allocation5 + $0x98] sm:$0xff]
    %v263 = vld [vmem:[#allocation5 + $0xa0] sm:$0xff]
    %v264 = vld [vmem:[#allocation5 + $0xa8] sm:$0xff]
    %v265 = vld [vmem:[#allocation5 + $0xb0] sm:$0xff]
    %v266 = vld [vmem:[#allocation5 + $0xb8] sm:$0xff]
    %v267 = vld [vmem:[#allocation5 + $0xc0] sm:$0xff]
    %v268 = vld [vmem:[#allocation5 + $0xc8] sm:$0xff]
    %v269 = vld [vmem:[#allocation5 + $0xd0] sm:$0xff]
    %v270 = vld [vmem:[#allocation5 + $0xd8] sm:$0xff]
    %v271 = vld [vmem:[#allocation5 + $0xe0] sm:$0xff]
    %v272 = vld [vmem:[#allocation5 + $0xe8] sm:$0xff]
    %v273 = vld [vmem:[#allocation5 + $0xf0] sm:$0xff]
    %v274 = vld [vmem:[#allocation5 + $0xf8] sm:$0xff]
    %v275 = vld [vmem:[#allocation5 + $0x100] sm:$0xff]
    %v276 = vld [vmem:[#allocation5 + $0x108] sm:$0xff]
    %v277 = vld [vmem:[#allocation5 + $0x110] sm:$0xff]
    %v278 = vld [vmem:[#allocation5 + $0x118] sm:$0xff]
    %v279 = vld [vmem:[#allocation5 + $0x120] sm:$0xff]
    %v280 = vld [vmem:[#allocation5 + $0x128] sm:$0xff]
    %v281 = vld [vmem:[#allocation5 + $0x130] sm:$0xff]
    %v282 = vld [vmem:[#allocation5 + $0x138] sm:$0xff]
    %v283 = vld [vmem:[#allocation5 + $0x140] sm:$0xff]
    %v284 = vld [vmem:[#allocation5 + $0x148] sm:$0xff]
    %v285 = vld [vmem:[#allocation5 + $0x150] sm:$0xff]
    %v286 = vld [vmem:[#allocation5 + $0x158] sm:$0xff]
    %v287 = vld [vmem:[#allocation5 + $0x160] sm:$0xff]
    %v288 = vld [vmem:[#allocation5 + $0x168] sm:$0xff]
    %v289 = vld [vmem:[#allocation5 + $0x170] sm:$0xff]
    %v290 = vld [vmem:[#allocation5 + $0x178] sm:$0xff]
    %v291 = vld [vmem:[#allocation5 + $0x180] sm:$0xff]
    %v292 = vld [vmem:[#allocation5 + $0x188] sm:$0xff]
    %v293 = vld [vmem:[#allocation5 + $0x190] sm:$0xff]
    %v294 = vld [vmem:[#allocation5 + $0x198] sm:$0xff]
    %v295 = vld [vmem:[#allocation5 + $0x1a0] sm:$0xff]
    %v296 = vld [vmem:[#allocation5 + $0x1a8] sm:$0xff]
    %v297 = vld [vmem:[#allocation5 + $0x1b0] sm:$0xff]
    %v298 = vld [vmem:[#allocation5 + $0x1b8] sm:$0xff]
    %v299 = vld [vmem:[#allocation5 + $0x1c0] sm:$0xff]
    %v300 = vld [vmem:[#allocation5 + $0x1c8] sm:$0xff]
    %v301 = vld [vmem:[#allocation5 + $0x1d0] sm:$0xff]
    %v302 = vld [vmem:[#allocation5 + $0x1d8] sm:$0xff]
    %v303 = vld [vmem:[#allocation5 + $0x1e0] sm:$0xff]
    %v304 = vld [vmem:[#allocation5 + $0x1e8] sm:$0xff]
    %v305 = vld [vmem:[#allocation5 + $0x1f0] sm:$0xff]
    %v306 = vld [vmem:[#allocation5 + $0x1f8] sm:$0xff]
    %v307 = vld [vmem:[%s4] sm:$0x3]
    %v309 = vlaneseq
    %v310 = vshrl.u32 %v309, 7
    %v311 = vsub.s32 0, %v310
    %v312 = vrot.slane %v307, %v311
    %v313 = vlaneseq
    %v314 = vshrl.u32 %v313, 7
    %v315 = vsub.s32 1, %v314
    %v316 = vrot.slane %v307, %v315
    %v383 = vunpack.c.l.b16 %v243
    %v384 = vunpack.c.h.b16 %v243
    %v385 = vunpack.c.l.b16 %v244
    %v386 = vunpack.c.h.b16 %v244
    %v387 = vunpack.c.l.b16 %v245
    %v388 = vunpack.c.h.b16 %v245
    %v389 = vunpack.c.l.b16 %v246
    %v390 = vunpack.c.h.b16 %v246
    %v391 = vunpack.c.l.b16 %v247
    %v392 = vunpack.c.h.b16 %v247
    %v393 = vunpack.c.l.b16 %v248
    %v394 = vunpack.c.h.b16 %v248
    %v395 = vunpack.c.l.b16 %v249
    %v396 = vunpack.c.h.b16 %v249
    %v397 = vunpack.c.l.b16 %v250
    %v398 = vunpack.c.h.b16 %v250
    %v399 = vunpack.c.l.b16 %v251
    %v400 = vunpack.c.h.b16 %v251
    %v401 = vunpack.c.l.b16 %v252
    %v402 = vunpack.c.h.b16 %v252
    %v403 = vunpack.c.l.b16 %v253
    %v404 = vunpack.c.h.b16 %v253
    %v405 = vunpack.c.l.b16 %v254
    %v406 = vunpack.c.h.b16 %v254
    %v407 = vunpack.c.l.b16 %v255
    %v408 = vunpack.c.h.b16 %v255
    %v409 = vunpack.c.l.b16 %v256
    %v410 = vunpack.c.h.b16 %v256
    %v411 = vunpack.c.l.b16 %v257
    %v412 = vunpack.c.h.b16 %v257
    %v413 = vunpack.c.l.b16 %v258
    %v414 = vunpack.c.h.b16 %v258
    %v415 = vunpack.c.l.b16 %v259
    %v416 = vunpack.c.h.b16 %v259
    %v417 = vunpack.c.l.b16 %v260
    %v418 = vunpack.c.h.b16 %v260
    %v419 = vunpack.c.l.b16 %v261
    %v420 = vunpack.c.h.b16 %v261
    %v421 = vunpack.c.l.b16 %v262
    %v422 = vunpack.c.h.b16 %v262
    %v423 = vunpack.c.l.b16 %v263
    %v424 = vunpack.c.h.b16 %v263
    %v425 = vunpack.c.l.b16 %v264
    %v426 = vunpack.c.h.b16 %v264
    %v427 = vunpack.c.l.b16 %v265
    %v428 = vunpack.c.h.b16 %v265
    %v429 = vunpack.c.l.b16 %v266
    %v430 = vunpack.c.h.b16 %v266
    %v431 = vunpack.c.l.b16 %v267
    %v432 = vunpack.c.h.b16 %v267
    %v433 = vunpack.c.l.b16 %v268
    %v434 = vunpack.c.h.b16 %v268
    %v435 = vunpack.c.l.b16 %v269
    %v436 = vunpack.c.h.b16 %v269
    %v437 = vunpack.c.l.b16 %v270
    %v438 = vunpack.c.h.b16 %v270
    %v439 = vunpack.c.l.b16 %v271
    %v440 = vunpack.c.h.b16 %v271
    %v441 = vunpack.c.l.b16 %v272
    %v442 = vunpack.c.h.b16 %v272
    %v443 = vunpack.c.l.b16 %v273
    %v444 = vunpack.c.h.b16 %v273
    %v445 = vunpack.c.l.b16 %v274
    %v446 = vunpack.c.h.b16 %v274
    %v447 = vunpack.c.l.b16 %v275
    %v448 = vunpack.c.h.b16 %v275
    %v449 = vunpack.c.l.b16 %v276
    %v450 = vunpack.c.h.b16 %v276
    %v451 = vunpack.c.l.b16 %v277
    %v452 = vunpack.c.h.b16 %v277
    %v453 = vunpack.c.l.b16 %v278
    %v454 = vunpack.c.h.b16 %v278
    %v455 = vunpack.c.l.b16 %v279
    %v456 = vunpack.c.h.b16 %v279
    %v457 = vunpack.c.l.b16 %v280
    %v458 = vunpack.c.h.b16 %v280
    %v459 = vunpack.c.l.b16 %v281
    %v460 = vunpack.c.h.b16 %v281
    %v461 = vunpack.c.l.b16 %v282
    %v462 = vunpack.c.h.b16 %v282
    %v463 = vunpack.c.l.b16 %v283
    %v464 = vunpack.c.h.b16 %v283
    %v465 = vunpack.c.l.b16 %v284
    %v466 = vunpack.c.h.b16 %v284
    %v467 = vunpack.c.l.b16 %v285
    %v468 = vunpack.c.h.b16 %v285
    %v469 = vunpack.c.l.b16 %v286
    %v470 = vunpack.c.h.b16 %v286
    %v471 = vunpack.c.l.b16 %v287
    %v472 = vunpack.c.h.b16 %v287
    %v473 = vunpack.c.l.b16 %v288
    %v474 = vunpack.c.h.b16 %v288
    %v475 = vunpack.c.l.b16 %v289
    %v476 = vunpack.c.h.b16 %v289
    %v477 = vunpack.c.l.b16 %v290
    %v478 = vunpack.c.h.b16 %v290
    %v479 = vunpack.c.l.b16 %v291
    %v480 = vunpack.c.h.b16 %v291
    %v481 = vunpack.c.l.b16 %v292
    %v482 = vunpack.c.h.b16 %v292
    %v483 = vunpack.c.l.b16 %v293
    %v484 = vunpack.c.h.b16 %v293
    %v485 = vunpack.c.l.b16 %v294
    %v486 = vunpack.c.h.b16 %v294
    %v487 = vunpack.c.l.b16 %v295
    %v488 = vunpack.c.h.b16 %v295
    %v489 = vunpack.c.l.b16 %v296
    %v490 = vunpack.c.h.b16 %v296
    %v491 = vunpack.c.l.b16 %v297
    %v492 = vunpack.c.h.b16 %v297
    %v493 = vunpack.c.l.b16 %v298
    %v494 = vunpack.c.h.b16 %v298
    %v495 = vunpack.c.l.b16 %v299
    %v496 = vunpack.c.h.b16 %v299
    %v497 = vunpack.c.l.b16 %v300
    %v498 = vunpack.c.h.b16 %v300
    %v499 = vunpack.c.l.b16 %v301
    %v500 = vunpack.c.h.b16 %v301
    %v501 = vunpack.c.l.b16 %v302
    %v502 = vunpack.c.h.b16 %v302
    %v503 = vunpack.c.l.b16 %v303
    %v504 = vunpack.c.h.b16 %v303
    %v505 = vunpack.c.l.b16 %v304
    %v506 = vunpack.c.h.b16 %v304
    %v507 = vunpack.c.l.b16 %v305
    %v508 = vunpack.c.h.b16 %v305
    %v509 = vunpack.c.l.b16 %v306
    %v510 = vunpack.c.h.b16 %v306
    %v511 = vpack.c.b16 %v385, %v383
    %v512 = vpack.c.b16 %v386, %v384
    %v513 = vpack.c.b16 %v389, %v387
    %v514 = vpack.c.b16 %v390, %v388
    %v515 = vpack.c.b16 %v393, %v391
    %v516 = vpack.c.b16 %v394, %v392
    %v517 = vpack.c.b16 %v397, %v395
    %v518 = vpack.c.b16 %v398, %v396
    %v519 = vpack.c.b16 %v401, %v399
    %v520 = vpack.c.b16 %v402, %v400
    %v521 = vpack.c.b16 %v405, %v403
    %v522 = vpack.c.b16 %v406, %v404
    %v523 = vpack.c.b16 %v409, %v407
    %v524 = vpack.c.b16 %v410, %v408
    %v525 = vpack.c.b16 %v413, %v411
    %v526 = vpack.c.b16 %v414, %v412
    %v527 = vpack.c.b16 %v417, %v415
    %v528 = vpack.c.b16 %v418, %v416
    %v529 = vpack.c.b16 %v421, %v419
    %v530 = vpack.c.b16 %v422, %v420
    %v531 = vpack.c.b16 %v425, %v423
    %v532 = vpack.c.b16 %v426, %v424
    %v533 = vpack.c.b16 %v429, %v427
    %v534 = vpack.c.b16 %v430, %v428
    %v535 = vpack.c.b16 %v433, %v431
    %v536 = vpack.c.b16 %v434, %v432
    %v537 = vpack.c.b16 %v437, %v435
    %v538 = vpack.c.b16 %v438, %v436
    %v539 = vpack.c.b16 %v441, %v439
    %v540 = vpack.c.b16 %v442, %v440
    %v541 = vpack.c.b16 %v445, %v443
    %v542 = vpack.c.b16 %v446, %v444
    %v543 = vpack.c.b16 %v449, %v447
    %v544 = vpack.c.b16 %v450, %v448
    %v545 = vpack.c.b16 %v453, %v451
    %v546 = vpack.c.b16 %v454, %v452
    %v547 = vpack.c.b16 %v457, %v455
    %v548 = vpack.c.b16 %v458, %v456
    %v549 = vpack.c.b16 %v461, %v459
    %v550 = vpack.c.b16 %v462, %v460
    %v551 = vpack.c.b16 %v465, %v463
    %v552 = vpack.c.b16 %v466, %v464
    %v553 = vpack.c.b16 %v469, %v467
    %v554 = vpack.c.b16 %v470, %v468
    %v555 = vpack.c.b16 %v473, %v471
    %v556 = vpack.c.b16 %v474, %v472
    %v557 = vpack.c.b16 %v477, %v475
    %v558 = vpack.c.b16 %v478, %v476
    %v559 = vpack.c.b16 %v481, %v479
    %v560 = vpack.c.b16 %v482, %v480
    %v561 = vpack.c.b16 %v485, %v483
    %v562 = vpack.c.b16 %v486, %v484
    %v563 = vpack.c.b16 %v489, %v487
    %v564 = vpack.c.b16 %v490, %v488
    %v565 = vpack.c.b16 %v493, %v491
    %v566 = vpack.c.b16 %v494, %v492
    %v567 = vpack.c.b16 %v497, %v495
    %v568 = vpack.c.b16 %v498, %v496
    %v569 = vpack.c.b16 %v501, %v499
    %v570 = vpack.c.b16 %v502, %v500
    %v571 = vpack.c.b16 %v505, %v503
    %v572 = vpack.c.b16 %v506, %v504
    %v573 = vpack.c.b16 %v509, %v507
    %v574 = vpack.c.b16 %v510, %v508
    %639 = vmatprep.subr.bf16.mxu0 %v526
    %640 = vmatpush1.bf16.msra.mxu0 %v525
    %641 = vmatprep.subr.bf16.mxu0 %v524
    %642 = vmatpush1.bf16.msra.mxu0 %v523
    %643 = vmatprep.subr.bf16.mxu0 %v522
    %644 = vmatpush1.bf16.msra.mxu0 %v521
    %645 = vmatprep.subr.bf16.mxu0 %v520
    %646 = vmatpush1.bf16.msra.mxu0 %v519
    %647 = vmatprep.subr.bf16.mxu0 %v518
    %648 = vmatpush1.bf16.msra.mxu0 %v517
    %649 = vmatprep.subr.bf16.mxu0 %v516
    %650 = vmatpush1.bf16.msra.mxu0 %v515
    %651 = vmatprep.subr.bf16.mxu0 %v514
    %652 = vmatpush1.bf16.msra.mxu0 %v513
    %653 = vmatprep.subr.bf16.mxu0 %v512
    %654 = vmatpush1.bf16.msra.mxu0 %v511
    %655 = vmatprep.subr.bf16.mxu0 %v542
    %656 = vmatpush2.bf16.msra.mxu0 %v541
    %657 = vmatprep.subr.bf16.mxu0 %v540
    %658 = vmatpush2.bf16.msra.mxu0 %v539
    %659 = vmatprep.subr.bf16.mxu0 %v538
    %660 = vmatpush2.bf16.msra.mxu0 %v537
    %661 = vmatprep.subr.bf16.mxu0 %v536
    %662 = vmatpush2.bf16.msra.mxu0 %v535
    %663 = vmatprep.subr.bf16.mxu0 %v534
    %664 = vmatpush2.bf16.msra.mxu0 %v533
    %665 = vmatprep.subr.bf16.mxu0 %v532
    %666 = vmatpush2.bf16.msra.mxu0 %v531
    %667 = vmatprep.subr.bf16.mxu0 %v530
    %668 = vmatpush2.bf16.msra.mxu0 %v529
    %669 = vmatprep.subr.bf16.mxu0 %v528
    %670 = vmatpush2.bf16.msra.mxu0 %v527
    %671 = vmatprep.mubr.bf16.mxu0 %v240
    %672 = vmatmul.mubr.bf16.gmra.mxu0 %v239
    %v673 = vpop.f32.mrf.mxu0
    %v674 = vadd.f32 %v312, %v673
    %v675 = vpop.f32.mrf.mxu0
    %v676 = vadd.f32 %v316, %v675
    %v677 = vpop.f32.mrf.mxu0
    %v678 = vadd.f32 %v312, %v677
    %v679 = vpop.f32.mrf.mxu0
    %v680 = vadd.f32 %v316, %v679
    %681 = vdwg.mxu0
    %682 = vmatprep.subr.bf16.mxu0 %v558
    %683 = vmatpush1.bf16.msra.mxu0 %v557
    %684 = vmatprep.subr.bf16.mxu0 %v556
    %685 = vmatpush1.bf16.msra.mxu0 %v555
    %686 = vmatprep.subr.bf16.mxu0 %v554
    %687 = vmatpush1.bf16.msra.mxu0 %v553
    %688 = vmatprep.subr.bf16.mxu0 %v552
    %689 = vmatpush1.bf16.msra.mxu0 %v551
    %690 = vmatprep.subr.bf16.mxu0 %v550
    %691 = vmatpush1.bf16.msra.mxu0 %v549
    %692 = vmatprep.subr.bf16.mxu0 %v548
    %693 = vmatpush1.bf16.msra.mxu0 %v547
    %694 = vmatprep.subr.bf16.mxu0 %v546
    %695 = vmatpush1.bf16.msra.mxu0 %v545
    %696 = vmatprep.subr.bf16.mxu0 %v544
    %697 = vmatpush1.bf16.msra.mxu0 %v543
    %698 = vmatprep.subr.bf16.mxu0 %v574
    %699 = vmatpush2.bf16.msra.mxu0 %v573
    %700 = vmatprep.subr.bf16.mxu0 %v572
    %701 = vmatpush2.bf16.msra.mxu0 %v571
    %702 = vmatprep.subr.bf16.mxu0 %v570
    %703 = vmatpush2.bf16.msra.mxu0 %v569
    %704 = vmatprep.subr.bf16.mxu0 %v568
    %705 = vmatpush2.bf16.msra.mxu0 %v567
    %706 = vmatprep.subr.bf16.mxu0 %v566
    %707 = vmatpush2.bf16.msra.mxu0 %v565
    %708 = vmatprep.subr.bf16.mxu0 %v564
    %709 = vmatpush2.bf16.msra.mxu0 %v563
    %710 = vmatprep.subr.bf16.mxu0 %v562
    %711 = vmatpush2.bf16.msra.mxu0 %v561
    %712 = vmatprep.subr.bf16.mxu0 %v560
    %713 = vmatpush2.bf16.msra.mxu0 %v559
    %714 = vmatprep.mubr.bf16.mxu0 %v242
    %715 = vmatmul.mubr.bf16.gmra.mxu0 %v241
    %v716 = vpop.f32.mrf.mxu0
    %v717 = vadd.f32 %v674, %v716
    %v718 = vpop.f32.mrf.mxu0
    %v719 = vadd.f32 %v676, %v718
    %v720 = vpop.f32.mrf.mxu0
    %v721 = vadd.f32 %v678, %v720
    %v722 = vpop.f32.mrf.mxu0
    %v723 = vadd.f32 %v680, %v722
    %724 = vdwg.mxu0
    %v725 = vmax.f32 %v717, 0.0
    %v726 = vmax.f32 %v719, 0.0
    %v727 = vmax.f32 %v721, 0.0
    %v728 = vmax.f32 %v723, 0.0
    %v729 = vpack.c.bf16 %v727, %v725
    %v730 = vpack.c.bf16 %v728, %v726
    %v731 = vld [vmem:[#allocation7] sm:$0xf]
    %v732 = vld [vmem:[#allocation7 + $0x4] sm:$0xf]
    %v733 = vld [vmem:[#allocation7 + $0x8] sm:$0xf]
    %v734 = vld [vmem:[#allocation7 + $0xc] sm:$0xf]
    %v735 = vld [vmem:[#allocation7 + $0x10] sm:$0xf]
    %v736 = vld [vmem:[#allocation7 + $0x14] sm:$0xf]
    %v737 = vld [vmem:[#allocation7 + $0x18] sm:$0xf]
    %v738 = vld [vmem:[#allocation7 + $0x1c] sm:$0xf]
    %v739 = vld [vmem:[#allocation7 + $0x20] sm:$0xf]
    %v740 = vld [vmem:[#allocation7 + $0x24] sm:$0xf]
    %v741 = vld [vmem:[#allocation7 + $0x28] sm:$0xf]
    %v742 = vld [vmem:[#allocation7 + $0x2c] sm:$0xf]
    %v743 = vld [vmem:[#allocation7 + $0x30] sm:$0xf]
    %v744 = vld [vmem:[#allocation7 + $0x34] sm:$0xf]
    %v745 = vld [vmem:[#allocation7 + $0x38] sm:$0xf]
    %v746 = vld [vmem:[#allocation7 + $0x3c] sm:$0xf]
    %v747 = vld [vmem:[#allocation7 + $0x40] sm:$0xf]
    %v748 = vld [vmem:[#allocation7 + $0x44] sm:$0xf]
    %v749 = vld [vmem:[#allocation7 + $0x48] sm:$0xf]
    %v750 = vld [vmem:[#allocation7 + $0x4c] sm:$0xf]
    %v751 = vld [vmem:[#allocation7 + $0x50] sm:$0xf]
    %v752 = vld [vmem:[#allocation7 + $0x54] sm:$0xf]
    %v753 = vld [vmem:[#allocation7 + $0x58] sm:$0xf]
    %v754 = vld [vmem:[#allocation7 + $0x5c] sm:$0xf]
    %v755 = vld [vmem:[#allocation7 + $0x60] sm:$0xf]
    %v756 = vld [vmem:[#allocation7 + $0x64] sm:$0xf]
    %v757 = vld [vmem:[#allocation7 + $0x68] sm:$0xf]
    %v758 = vld [vmem:[#allocation7 + $0x6c] sm:$0xf]
    %v759 = vld [vmem:[#allocation7 + $0x70] sm:$0xf]
    %v760 = vld [vmem:[#allocation7 + $0x74] sm:$0xf]
    %v761 = vld [vmem:[#allocation7 + $0x78] sm:$0xf]
    %v762 = vld [vmem:[#allocation7 + $0x7c] sm:$0xf]
    %v763 = vld [vmem:[%s6] sm:$0x1]
    %v765 = vlaneseq
    %v766 = vshrl.u32 %v765, 7
    %v767 = vsub.s32 0, %v766
    %v768 = vrot.slane %v763, %v767
    %v802 = vunpack.c.l.b16 %v731
    %v803 = vunpack.c.l.b16 %v732
    %v804 = vunpack.c.l.b16 %v733
    %v805 = vunpack.c.l.b16 %v734
    %v806 = vunpack.c.l.b16 %v735
    %v807 = vunpack.c.l.b16 %v736
    %v808 = vunpack.c.l.b16 %v737
    %v809 = vunpack.c.l.b16 %v738
    %v810 = vunpack.c.l.b16 %v739
    %v811 = vunpack.c.l.b16 %v740
    %v812 = vunpack.c.l.b16 %v741
    %v813 = vunpack.c.l.b16 %v742
    %v814 = vunpack.c.l.b16 %v743
    %v815 = vunpack.c.l.b16 %v744
    %v816 = vunpack.c.l.b16 %v745
    %v817 = vunpack.c.l.b16 %v746
    %v818 = vunpack.c.l.b16 %v747
    %v819 = vunpack.c.l.b16 %v748
    %v820 = vunpack.c.l.b16 %v749
    %v821 = vunpack.c.l.b16 %v750
    %v822 = vunpack.c.l.b16 %v751
    %v823 = vunpack.c.l.b16 %v752
    %v824 = vunpack.c.l.b16 %v753
    %v825 = vunpack.c.l.b16 %v754
    %v826 = vunpack.c.l.b16 %v755
    %v827 = vunpack.c.l.b16 %v756
    %v828 = vunpack.c.l.b16 %v757
    %v829 = vunpack.c.l.b16 %v758
    %v830 = vunpack.c.l.b16 %v759
    %v831 = vunpack.c.l.b16 %v760
    %v832 = vunpack.c.l.b16 %v761
    %v833 = vunpack.c.l.b16 %v762
    %v834 = vpack.c.b16 %v803, %v802
    %v835 = vpack.c.b16 %v805, %v804
    %v836 = vpack.c.b16 %v807, %v806
    %v837 = vpack.c.b16 %v809, %v808
    %v838 = vpack.c.b16 %v811, %v810
    %v839 = vpack.c.b16 %v813, %v812
    %v840 = vpack.c.b16 %v815, %v814
    %v841 = vpack.c.b16 %v817, %v816
    %v842 = vpack.c.b16 %v819, %v818
    %v843 = vpack.c.b16 %v821, %v820
    %v844 = vpack.c.b16 %v823, %v822
    %v845 = vpack.c.b16 %v825, %v824
    %v846 = vpack.c.b16 %v827, %v826
    %v847 = vpack.c.b16 %v829, %v828
    %v848 = vpack.c.b16 %v831, %v830
    %v849 = vpack.c.b16 %v833, %v832
    %866 = vmatprep.subr.bf16.mxu0 0
    %867 = vmatpush1.bf16.msra.mxu0 %v841
    %868 = vmatprep.subr.bf16.mxu0 0
    %869 = vmatpush1.bf16.msra.mxu0 %v840
    %870 = vmatprep.subr.bf16.mxu0 0
    %871 = vmatpush1.bf16.msra.mxu0 %v839
    %872 = vmatprep.subr.bf16.mxu0 0
    %873 = vmatpush1.bf16.msra.mxu0 %v838
    %874 = vmatprep.subr.bf16.mxu0 0
    %875 = vmatpush1.bf16.msra.mxu0 %v837
    %876 = vmatprep.subr.bf16.mxu0 0
    %877 = vmatpush1.bf16.msra.mxu0 %v836
    %878 = vmatprep.subr.bf16.mxu0 0
    %879 = vmatpush1.bf16.msra.mxu0 %v835
    %880 = vmatprep.subr.bf16.mxu0 0
    %881 = vmatpush1.bf16.msra.mxu0 %v834
    %882 = vmatprep.subr.bf16.mxu0 0
    %883 = vmatpush2.bf16.msra.mxu0 %v849
    %884 = vmatprep.subr.bf16.mxu0 0
    %885 = vmatpush2.bf16.msra.mxu0 %v848
    %886 = vmatprep.subr.bf16.mxu0 0
    %887 = vmatpush2.bf16.msra.mxu0 %v847
    %888 = vmatprep.subr.bf16.mxu0 0
    %889 = vmatpush2.bf16.msra.mxu0 %v846
    %890 = vmatprep.subr.bf16.mxu0 0
    %891 = vmatpush2.bf16.msra.mxu0 %v845
    %892 = vmatprep.subr.bf16.mxu0 0
    %893 = vmatpush2.bf16.msra.mxu0 %v844
    %894 = vmatprep.subr.bf16.mxu0 0
    %895 = vmatpush2.bf16.msra.mxu0 %v843
    %896 = vmatprep.subr.bf16.mxu0 0
    %897 = vmatpush2.bf16.msra.mxu0 %v842
    %898 = vmatprep.mubr.bf16.mxu0 %v730
    %899 = vmatmul.mubr.bf16.gmra.mxu0 %v729
    %v900 = vpop.f32.mrf.mxu0
    %v901 = vadd.f32 %v768, %v900
    %v902 = vpop.f32.mrf.mxu0
    %v903 = vpop.f32.mrf.mxu0
    %v904 = vadd.f32 %v768, %v903
    %v905 = vpop.f32.mrf.mxu0
    %906 = vdwg.mxu0
    %v907 = vmax.f32 %v901, 0.0
    %v908 = vmax.f32 %v904, 0.0
    %v909 = vpack.c.bf16 %v908, %v907
    %v910 = vld [vmem:[#allocation8] sm:$0xf]
    %v911 = vld [vmem:[#allocation8 + $0x4] sm:$0xf]
    %v912 = vld [vmem:[#allocation8 + $0x8] sm:$0xf]
    %v913 = vld [vmem:[#allocation8 + $0xc] sm:$0xf]
    %v914 = vld [vmem:[#allocation8 + $0x10] sm:$0xf]
    %v915 = vld [vmem:[#allocation8 + $0x14] sm:$0xf]
    %v916 = vld [vmem:[#allocation8 + $0x18] sm:$0xf]
    %v917 = vld [vmem:[#allocation8 + $0x1c] sm:$0xf]
    %v918 = vld [vmem:[#allocation8 + $0x20] sm:$0xf]
    %v919 = vld [vmem:[#allocation8 + $0x24] sm:$0xf]
    %v920 = vld [vmem:[#allocation8 + $0x28] sm:$0xf]
    %v921 = vld [vmem:[#allocation8 + $0x2c] sm:$0xf]
    %v922 = vld [vmem:[#allocation8 + $0x30] sm:$0xf]
    %v923 = vld [vmem:[#allocation8 + $0x34] sm:$0xf]
    %v924 = vld [vmem:[#allocation8 + $0x38] sm:$0xf]
    %v925 = vld [vmem:[#allocation8 + $0x3c] sm:$0xf]
    %v926 = vld [vmem:[%s8] sm:$0x1]
    %v928 = vlaneseq
    %v929 = vshrl.u32 %v928, 7
    %v930 = vsub.s32 0, %v929
    %v931 = vrot.slane %v926, %v930
    %v949 = vunpack.c.l.b16 %v910
    %v950 = vunpack.c.l.b16 %v911
    %v951 = vunpack.c.l.b16 %v912
    %v952 = vunpack.c.l.b16 %v913
    %v953 = vunpack.c.l.b16 %v914
    %v954 = vunpack.c.l.b16 %v915
    %v955 = vunpack.c.l.b16 %v916
    %v956 = vunpack.c.l.b16 %v917
    %v957 = vunpack.c.l.b16 %v918
    %v958 = vunpack.c.l.b16 %v919
    %v959 = vunpack.c.l.b16 %v920
    %v960 = vunpack.c.l.b16 %v921
    %v961 = vunpack.c.l.b16 %v922
    %v962 = vunpack.c.l.b16 %v923
    %v963 = vunpack.c.l.b16 %v924
    %v964 = vunpack.c.l.b16 %v925
    %v965 = vpack.c.b16 %v950, %v949
    %v966 = vpack.c.b16 %v952, %v951
    %v967 = vpack.c.b16 %v954, %v953
    %v968 = vpack.c.b16 %v956, %v955
    %v969 = vpack.c.b16 %v958, %v957
    %v970 = vpack.c.b16 %v960, %v959
    %v971 = vpack.c.b16 %v962, %v961
    %v972 = vpack.c.b16 %v964, %v963
    %981 = vmatprep.subr.bf16.mxu0 0
    %982 = vmatpush1.bf16.msra.mxu0 %v972
    %983 = vmatprep.subr.bf16.mxu0 0
    %984 = vmatpush1.bf16.msra.mxu0 %v971
    %985 = vmatprep.subr.bf16.mxu0 0
    %986 = vmatpush1.bf16.msra.mxu0 %v970
    %987 = vmatprep.subr.bf16.mxu0 0
    %988 = vmatpush1.bf16.msra.mxu0 %v969
    %989 = vmatprep.subr.bf16.mxu0 0
    %990 = vmatpush1.bf16.msra.mxu0 %v968
    %991 = vmatprep.subr.bf16.mxu0 0
    %992 = vmatpush1.bf16.msra.mxu0 %v967
    %993 = vmatprep.subr.bf16.mxu0 0
    %994 = vmatpush1.bf16.msra.mxu0 %v966
    %995 = vmatprep.subr.bf16.mxu0 0
    %996 = vmatpush1.bf16.msra.mxu0 %v965
    %997 = vmatprep.subr.bf16.mxu0 0
    %998 = vmatpush2.bf16.msra.mxu0 0
    %999 = vmatprep.subr.bf16.mxu0 0
    %1000 = vmatpush2.bf16.msra.mxu0 0
    %1001 = vmatprep.subr.bf16.mxu0 0
    %1002 = vmatpush2.bf16.msra.mxu0 0
    %1003 = vmatprep.subr.bf16.mxu0 0
    %1004 = vmatpush2.bf16.msra.mxu0 0
    %1005 = vmatprep.subr.bf16.mxu0 0
    %1006 = vmatpush2.bf16.msra.mxu0 0
    %1007 = vmatprep.subr.bf16.mxu0 0
    %1008 = vmatpush2.bf16.msra.mxu0 0
    %1009 = vmatprep.subr.bf16.mxu0 0
    %1010 = vmatpush2.bf16.msra.mxu0 0
    %1011 = vmatprep.subr.bf16.mxu0 0
    %1012 = vmatpush2.bf16.msra.mxu0 0
    %1013 = vmatprep.mubr.bf16.mxu0 0
    %1014 = vmatmul.mubr.bf16.gmra.mxu0 %v909
    %v1015 = vpop.f32.mrf.mxu0
    %v1016 = vadd.f32 %v931, %v1015
    %v1017 = vpop.f32.mrf.mxu0
    %v1018 = vpop.f32.mrf.mxu0
    %v1019 = vadd.f32 %v931, %v1018
    %v1020 = vpop.f32.mrf.mxu0
    %1021 = vdwg.mxu0
    %1022 = vst [vmem:[#allocation10] sm:$0xff] %v1016
    %1023 = vst [vmem:[#allocation10 + $0x8] sm:$0xff] %v1019
    // Predicated region
    $region54: #{tpu_custom_call.1} parent=1 // pred_check
      _
    $region55: #{tpu_custom_call.1} parent=1 // pred_check_branch
      %1025 = sbr.rel (0) target = $region57
    $region56: #{tpu_custom_call.1} parent=1 // pred_region
      %s1027 = ssub.s32 256, 256
      %1028 = vsyncadd [#allocation4], %s1027
      %s1029 = sshll.u32 [#allocation10], 4
      %s1030 = int_to_ptr.vmem [resolvable:$true] %s1029
      %1035 = dma.vmem_to_hbm [thread:$0]  %s1030, 256, %s9, [#allocation4], 128, 128, 8
    $region57: #{tpu_custom_call.1} parent=1 // pred_fallthru
      _
    // Predicated region
    $region58: #{tpu_custom_call.1} parent=1 // pred_check
      _
    $region59: #{tpu_custom_call.1} parent=1 // pred_check_branch
      %1037 = sbr.rel (0) target = $region61
    $region60: #{tpu_custom_call.1} parent=1 // pred_region
      %1038 = dma.done [#allocation4], 256
    $region61: #{tpu_custom_call.1} parent=1 // pred_fallthru
      _
    %1039 = vsyncpa [#allocation3], 1
    %1040 = vsyncpa [#allocation6], 1
    %1041 = vsyncpa [#allocation9], 1
    %1042 = vsyncpa [#allocation4], 1

</llo_original>
